<compile_context>
chip_gen: v5e
topology: v5e:2x2
jax: 0.10.0
libtpu: 0.0.40
codegen_flags: <defaults>
</compile_context>

<pallas_src>
import numpy as np

import jax
import jax.numpy as jnp
from jax import lax
from jax.experimental import pallas as pl
from jax.experimental.pallas import tpu as pltpu


# --------------------------------------------------------------------------
# Kernel
# --------------------------------------------------------------------------
def _make_kernel(bt, C):
    """Per grid step:  out[b] = sum_c x[b, c] @ Q[c]   (plain 2-D MXU matmuls).

    bt and C are small trace-time constants, so the loops fully unroll.
    """

    def kernel(x_ref, q_ref, o_ref):
        # x_ref: (bt, C, th, L)    q_ref: (C, L, N)    o_ref: (bt, th, N)
        for b in range(bt):
            acc = None
            for c in range(C):
                part = jnp.dot(
                    x_ref[b, c, :, :],            # (th, L) — static leading idx
                    q_ref[c],                      # (L, N)  one-hot scatter
                    precision=lax.Precision.HIGHEST,   # exact 0/1 matmul for f32
                    preferred_element_type=jnp.float32,
                )
                acc = part if acc is None else acc + part
            o_ref[b, :, :] = acc.astype(o_ref.dtype)

    return kernel


# --------------------------------------------------------------------------
# Host-side helpers
# --------------------------------------------------------------------------
def _build_scatter(C, W, p1, p2, dtype):
    """One-hot Q[c, l, n]: input lane l = (p1_i, w_i, p2_i) of channel c lands
    at output lane n = ((w_i*p1 + p1_i)*p2 + p2_i)*C + c within its patch row."""
    L = p1 * W
    N = C * L
    q = np.zeros((C, L, N), dtype=np.float32)
    for l in range(L):
        p1_i, rem = divmod(l, W)
        w_i, p2_i = divmod(rem, p2)
        base = ((w_i * p1 + p1_i) * p2 + p2_i) * C
        for c in range(C):
            q[c, l, base + c] = 1.0
    return jnp.asarray(q, dtype=dtype)


def _vmem_capacity_bytes():
    """Generation-aware VMEM capacity (v5e/v6e: 128 MiB, v7x: 64 MiB)."""
    try:
        return int(pltpu.get_tpu_info().vmem_capacity_bytes)
    except Exception:
        return 64 << 20  # v7x-safe default


def _pick_tiles(B, C, h, L, itemsize, vmem_cap):
    """Pick (bt images, th patch-rows) per grid step.

    Budget: double-buffered input (bt*C*th*L) + output (bt*th*C*L) blocks plus
    the resident scatter matrix and ~1 block of intermediates stay well inside
    VMEM (v7x only has 64 MiB).  Keep >= 2 grid steps whenever B >= 2 so both
    v7x TensorCores get work; bt is Python-unrolled in the kernel, so cap at 8.
    """
    N = C * L
    q_bytes = C * L * N * itemsize
    row_bytes = 2 * C * L * itemsize                  # in + out per (image, patch-row)
    budget = max(1 << 20, int(0.40 * vmem_cap) - q_bytes)
    max_rows = max(1, budget // (2 * row_bytes))      # 2x: double buffering

    # th: sublane dim of both blocks -> full h, else a multiple-of-8 divisor.
    if h <= max_rows:
        th = h
    else:
        div8 = [d for d in range(8, h, 8) if h % d == 0 and d <= max_rows]
        th = max(div8) if div8 else h                 # full dim is always legal

    # bt: images per step; must divide B, fit the budget, keep the grid >= 2.
    h_steps = h // th
    bt = 1
    for cand in range(1, min(B, 8) + 1):
        if B % cand:
            continue
        if cand * th > max_rows:
            continue
        if B >= 2 and (B // cand) * h_steps < 2:
            continue
        bt = cand
    return bt, th


def _reference(x, p1=2, p2=2):
    """Plain-JAX reference for the same einops pattern (also tiny-input path)."""
    B, C, H, W = x.shape
    h, w = H // p1, W // p2
    y = x.reshape(B, C, h, p1, w, p2)
    y = jnp.transpose(y, (0, 2, 4, 3, 5, 1))
    return y.reshape(B, h * w, p1 * p2 * C)


# --------------------------------------------------------------------------
# Public wrapper
# --------------------------------------------------------------------------
def rearrange_patchify(x, p1=2, p2=2, *, min_pallas_bytes=1 << 20):
    """einops.rearrange(x, 'b c (h p1) (w p2) -> b (h w) (p1 p2 c)', p1=p1, p2=p2)."""
    B, C, H, W = x.shape
    assert H % p1 == 0 and W % p2 == 0
    h, w = H // p1, W // p2
    L = p1 * W                      # input lanes per (image, patch-row)
    N = w * p1 * p2 * C             # output lanes per (image, patch-row) == C * L
    itemsize = x.dtype.itemsize
    total_bytes = x.size * itemsize

    if total_bytes < min_pallas_bytes or not jnp.issubdtype(x.dtype, jnp.floating):
        # Tiny inputs (launch cost dominates) and non-float dtypes (the MXU
        # scatter path is float-only) use XLA's fused reshape/transpose.
        return _reference(x, p1=p1, p2=p2)

    vmem_cap = _vmem_capacity_bytes()
    bt, th = _pick_tiles(B, C, h, L, itemsize, vmem_cap)
    grid = (B // bt, h // th)

    x4 = x.reshape(B, C, h, L)                       # free, contiguous view
    q = _build_scatter(C, W, p1, p2, x.dtype)        # (C, L, N) one-hot scatter

    out3 = pl.pallas_call(
        _make_kernel(bt, C),
        out_shape=jax.ShapeDtypeStruct((B, h, N), x.dtype),
        grid=grid,
        in_specs=[
            pl.BlockSpec((bt, C, th, L), lambda b, i: (b, 0, i, 0)),
            pl.BlockSpec((C, L, N), lambda b, i: (0, 0, 0)),   # resident constant
        ],
        out_specs=pl.BlockSpec((bt, th, N), lambda b, i: (b, i, 0)),
        compiler_params=pltpu.CompilerParams(
            dimension_semantics=("parallel", "parallel"),
            vmem_limit_bytes=int(min(0.75 * vmem_cap, 100 * (1 << 20))),
        ),
        cost_estimate=pl.CostEstimate(
            flops=2 * B * h * C * L * N,
            transcendentals=0,
            bytes_accessed=2 * total_bytes + int(q.size) * itemsize,
        ),
    )(x4, q)

    # Free, contiguous reshape back to the einops result shape.
    return out3.reshape(B, h * w, p1 * p2 * C)


# --------------------------------------------------------------------------
# Demo / self-test
# --------------------------------------------------------------------------
if __name__ == "__main__":
    key = jax.random.PRNGKey(0)
    # Small shapes consistent with the module's forward: NCHW input.
    x = jax.random.normal(key, (2, 4, 16, 16), dtype=jnp.float32)

    # min_pallas_bytes=0 forces the Pallas path even at this demo-tiny size
    # (the default would hand such small inputs to XLA's fused transpose).
    fn = jax.jit(lambda v: rearrange_patchify(v, 2, 2, min_pallas_bytes=0))
    out = jax.block_until_ready(fn(x))

    ref = _reference(x, 2, 2)
    assert out.shape == ref.shape == (2, 64, 16)
    assert jnp.allclose(out, ref), "Pallas rearrange mismatch vs reference"

    print("KERNEL_OK")
</pallas_src>

<mosaic_0001>
module attributes {stable_mosaic.version = 11 : i64} {
  func.func @kernel(%arg0: i32, %arg1: i32, %arg2: memref<1x4x8x32xf32, #tpu.memory_space<vmem>>, %arg3: memref<4x32x128xf32, #tpu.memory_space<vmem>>, %arg4: memref<1x8x128xf32, #tpu.memory_space<vmem>>) attributes {dimension_semantics = [#tpu.dimension_semantics<parallel>, #tpu.dimension_semantics<parallel>], iteration_bounds = array<i64: 2, 1>, scalar_prefetch = 0 : i64, scratch_operands = 0 : i64, tpu.core_type = #tpu.core_type<tc>, window_params = [{transform_indices = @transform_0, window_bounds = array<i64: 1, 4, 8, 32>}, {pipeline_mode = #tpu.pipeline_mode<synchronous>, transform_indices = @transform_1, window_bounds = array<i64: 4, 32, 128>}, {transform_indices = @transform_2, window_bounds = array<i64: 1, 8, 128>}]} {
    %c0 = arith.constant 0 : index
    %c0_0 = arith.constant 0 : index
    %c0_1 = arith.constant 0 : index
    %c0_2 = arith.constant 0 : index
    %0 = vector.load %arg2[%c0, %c0_0, %c0_1, %c0_2] : memref<1x4x8x32xf32, #tpu.memory_space<vmem>>, vector<1x1x8x32xf32>
    %1 = vector.shape_cast %0 : vector<1x1x8x32xf32> to vector<8x32xf32>
    %c0_3 = arith.constant 0 : index
    %c0_4 = arith.constant 0 : index
    %c0_5 = arith.constant 0 : index
    %2 = vector.load %arg3[%c0_3, %c0_4, %c0_5] : memref<4x32x128xf32, #tpu.memory_space<vmem>>, vector<1x32x128xf32>
    %3 = vector.shape_cast %2 : vector<1x32x128xf32> to vector<32x128xf32>
    %cst = arith.constant dense<0.000000e+00> : vector<8x128xf32>
    %4 = tpu.matmul %1, %3, %cst {dimension_numbers = #tpu.dot_dimension_numbers<[1], [0], [0], [1], [0, 0, 1, 1], [], []>, precision = #tpu.contract_precision<fp32>} : vector<8x32xf32>, vector<32x128xf32>, vector<8x128xf32> -> vector<8x128xf32>
    %c0_6 = arith.constant 0 : index
    %c1 = arith.constant 1 : index
    %c0_7 = arith.constant 0 : index
    %c0_8 = arith.constant 0 : index
    %5 = vector.load %arg2[%c0_6, %c1, %c0_7, %c0_8] : memref<1x4x8x32xf32, #tpu.memory_space<vmem>>, vector<1x1x8x32xf32>
    %6 = vector.shape_cast %5 : vector<1x1x8x32xf32> to vector<8x32xf32>
    %c1_9 = arith.constant 1 : index
    %c0_10 = arith.constant 0 : index
    %c0_11 = arith.constant 0 : index
    %7 = vector.load %arg3[%c1_9, %c0_10, %c0_11] : memref<4x32x128xf32, #tpu.memory_space<vmem>>, vector<1x32x128xf32>
    %8 = vector.shape_cast %7 : vector<1x32x128xf32> to vector<32x128xf32>
    %cst_12 = arith.constant dense<0.000000e+00> : vector<8x128xf32>
    %9 = tpu.matmul %6, %8, %cst_12 {dimension_numbers = #tpu.dot_dimension_numbers<[1], [0], [0], [1], [0, 0, 1, 1], [], []>, precision = #tpu.contract_precision<fp32>} : vector<8x32xf32>, vector<32x128xf32>, vector<8x128xf32> -> vector<8x128xf32>
    %10 = arith.addf %4, %9 : vector<8x128xf32>
    %c0_13 = arith.constant 0 : index
    %c2 = arith.constant 2 : index
    %c0_14 = arith.constant 0 : index
    %c0_15 = arith.constant 0 : index
    %11 = vector.load %arg2[%c0_13, %c2, %c0_14, %c0_15] : memref<1x4x8x32xf32, #tpu.memory_space<vmem>>, vector<1x1x8x32xf32>
    %12 = vector.shape_cast %11 : vector<1x1x8x32xf32> to vector<8x32xf32>
    %c2_16 = arith.constant 2 : index
    %c0_17 = arith.constant 0 : index
    %c0_18 = arith.constant 0 : index
    %13 = vector.load %arg3[%c2_16, %c0_17, %c0_18] : memref<4x32x128xf32, #tpu.memory_space<vmem>>, vector<1x32x128xf32>
    %14 = vector.shape_cast %13 : vector<1x32x128xf32> to vector<32x128xf32>
    %cst_19 = arith.constant dense<0.000000e+00> : vector<8x128xf32>
    %15 = tpu.matmul %12, %14, %cst_19 {dimension_numbers = #tpu.dot_dimension_numbers<[1], [0], [0], [1], [0, 0, 1, 1], [], []>, precision = #tpu.contract_precision<fp32>} : vector<8x32xf32>, vector<32x128xf32>, vector<8x128xf32> -> vector<8x128xf32>
    %16 = arith.addf %10, %15 : vector<8x128xf32>
    %c0_20 = arith.constant 0 : index
    %c3 = arith.constant 3 : index
    %c0_21 = arith.constant 0 : index
    %c0_22 = arith.constant 0 : index
    %17 = vector.load %arg2[%c0_20, %c3, %c0_21, %c0_22] : memref<1x4x8x32xf32, #tpu.memory_space<vmem>>, vector<1x1x8x32xf32>
    %18 = vector.shape_cast %17 : vector<1x1x8x32xf32> to vector<8x32xf32>
    %c3_23 = arith.constant 3 : index
    %c0_24 = arith.constant 0 : index
    %c0_25 = arith.constant 0 : index
    %19 = vector.load %arg3[%c3_23, %c0_24, %c0_25] : memref<4x32x128xf32, #tpu.memory_space<vmem>>, vector<1x32x128xf32>
    %20 = vector.shape_cast %19 : vector<1x32x128xf32> to vector<32x128xf32>
    %cst_26 = arith.constant dense<0.000000e+00> : vector<8x128xf32>
    %21 = tpu.matmul %18, %20, %cst_26 {dimension_numbers = #tpu.dot_dimension_numbers<[1], [0], [0], [1], [0, 0, 1, 1], [], []>, precision = #tpu.contract_precision<fp32>} : vector<8x32xf32>, vector<32x128xf32>, vector<8x128xf32> -> vector<8x128xf32>
    %22 = arith.addf %16, %21 : vector<8x128xf32>
    %c0_27 = arith.constant 0 : index
    %c0_28 = arith.constant 0 : index
    %c0_29 = arith.constant 0 : index
    %23 = vector.load %arg4[%c0_27, %c0_28, %c0_29] : memref<1x8x128xf32, #tpu.memory_space<vmem>>, vector<1x8x128xf32>
    %24 = vector.shape_cast %23 : vector<1x8x128xf32> to vector<8x128xf32>
    %25 = vector.shape_cast %22 : vector<8x128xf32> to vector<1x8x128xf32>
    tpu.vector_store %arg4[%c0_27, %c0_28, %c0_29], %25 {strides = array<i32>} : memref<1x8x128xf32, #tpu.memory_space<vmem>>, vector<1x8x128xf32>,
    return
  }
  func.func @transform_0(%arg0: i32, %arg1: i32) -> (i32, i32, i32, i32) {
    %c0_i32 = arith.constant 0 : i32
    %c0_i32_0 = arith.constant 0 : i32
    %c0_i32_1 = arith.constant 0 : i32
    return %arg0, %c0_i32, %arg1, %c0_i32_0 : i32, i32, i32, i32
  }
  func.func @transform_1(%arg0: i32, %arg1: i32) -> (i32, i32, i32) {
    %c0_i32 = arith.constant 0 : i32
    %c0_i32_0 = arith.constant 0 : i32
    %c0_i32_1 = arith.constant 0 : i32
    %c0_i32_2 = arith.constant 0 : i32
    return %c0_i32, %c0_i32_0, %c0_i32_1 : i32, i32, i32
  }
  func.func @transform_2(%arg0: i32, %arg1: i32) -> (i32, i32, i32) {
    %c0_i32 = arith.constant 0 : i32
    %c0_i32_0 = arith.constant 0 : i32
    return %arg0, %arg1, %c0_i32 : i32, i32, i32
  }
}

</mosaic_0001>

<llo_original>
// kernel: _lambda_.1
$region0: #{_lambda_.1}
  #allocation0 [shape = 'u32[]', space=smem, size = 0x4, offset = 0x4, fixed_abs, tag = 'smem constant byte address 0x4 - core index']
  #allocation1 [shape = 'u32[72,128]{1,0:T(1,128)}', space=vmem, size = 0x9000, scoped, tag = 'internal scratch']
  %s0 = inlined_call_operand.vmem [shape: f32[2,4,8,32], index: 0, kind: input, shape index: {}]
  %s1 = inlined_call_operand.vmem [shape: f32[4,32,128], index: 1, kind: input, shape index: {}]
  %s2 = inlined_call_operand.vmem [shape: f32[2,8,128], index: 2, kind: output, shape index: {}]
  %s3 = sld [smem:[#allocation0]]
  $region41: #{_lambda_.1} parent=0
    _
  %s5 = ssub.s32 1, %s3
  %s6 = scalar_select 0, %s5, %s3
  loop: start=0, step=1, limit=4
  $region2: #{_lambda_.1} parent=0 // loop_pre_header
    _
  $region3: #{_lambda_.1} parent=0 // loop_header
    %s8 = sphi 0, %s12
    %p9 = scmp.ge.s32.totalorder %s8, 4
    %s15 = sphi 0, %s27
    %s16 = sphi 0, %s23
    %s17 = sphi 0, %s15
    %s18 = sphi 0, %s16
    %s19 = sphi 0, %s17
    %s20 = sphi 0, %s18
    %s32 = sphi 0, %s34
    %s35 = sphi 0, %s32
    %s36 = sphi 0, %s35
    %s52 = sphi 0, %s36
    %s56 = sphi 0, %s56
    %s58 = sphi 0, %s56
    %s59 = sphi 0, %s58
    %s73 = sphi 0, %s59
    %s81 = sphi 0, %s83
    %s84 = sphi 0, %s81
    %s85 = sphi 0, %s84
    %s101 = sphi 0, %s85
  $region4: #{_lambda_.1} parent=0 // loop_header_branch
    %11 = sbr.rel (%p9) target = $region8
  $region5: #{_lambda_.1} parent=0 // loop_body
    %s13 = ssub.s32 %s8, 1
    %s14 = ssub.s32 %s8, 2
    %s21 = sadd.s32 1, %s16
    %p22 = scmp.ge.s32.totalorder %s21, 1
    %s23 = scalar_select %p22, 0, %s21
    %s24 = sadd.s32 1, %s15
    %s25 = scalar_select %p22, %s24, %s15
    %p26 = scmp.ge.s32.totalorder %s25, 2
    %s27 = scalar_select %p26, 0, %s25
    %s28 = ssub.s32 %s15, %s27
    %s29 = ssub.s32 %s16, %s23
    %s30 = sor.u32 %s28, %s29
    %p31 = scmp.eq.s32.totalorder %s30, 0
    %s33 = sadd.s32 %s32, 1
    %s34 = scalar_select %p31, %s32, %s33
    %p37 = pneg %p31
    %p38 = scmp.eq.s32.totalorder %s8, 1
    %p39 = por %p37, %p38
    %p40 = scmp.ne.s32.totalorder %s32, %s35
    %p41 = scmp.eq.s32.totalorder %s8, 0
    %p42 = por %p40, %p41
    %p43 = scmp.ne.s32.totalorder %s32, %s35
    %p44 = scmp.eq.s32.totalorder %s13, 1
    %p45 = por %p43, %p44
    %p46 = scmp.ne.s32.totalorder %s35, %s36
    %p47 = scmp.eq.s32.totalorder %s13, 0
    %p48 = por %p46, %p47
    %p49 = scmp.ne.s32.totalorder %s35, %s36
    %p50 = scmp.eq.s32.totalorder %s14, 1
    %p51 = por %p49, %p50
    %p53 = scmp.ne.s32.totalorder %s36, %s52
    %p54 = scmp.eq.s32.totalorder %s14, 0
    %p55 = por %p53, %p54
    %s57 = sadd.s32 %s56, 1
    %p60 = scmp.eq.s32.totalorder %s8, 1
    %p61 = scmp.ne.s32.totalorder %s56, %s58
    %p62 = scmp.eq.s32.totalorder %s8, 0
    %p63 = por %p61, %p62
    %p64 = scmp.ne.s32.totalorder %s56, %s58
    %p65 = scmp.eq.s32.totalorder %s13, 1
    %p66 = por %p64, %p65
    %p67 = scmp.ne.s32.totalorder %s58, %s59
    %p68 = scmp.eq.s32.totalorder %s13, 0
    %p69 = por %p67, %p68
    %p70 = scmp.ne.s32.totalorder %s58, %s59
    %p71 = scmp.eq.s32.totalorder %s14, 1
    %p72 = por %p70, %p71
    %p74 = scmp.ne.s32.totalorder %s59, %s73
    %p75 = scmp.eq.s32.totalorder %s14, 0
    %p76 = por %p74, %p75
    %s77 = ssub.s32 %s15, %s27
    %s78 = ssub.s32 %s16, %s23
    %s79 = sor.u32 %s77, %s78
    %p80 = scmp.eq.s32.totalorder %s79, 0
    %s82 = sadd.s32 %s81, 1
    %s83 = scalar_select %p80, %s81, %s82
    %p86 = pneg %p80
    %p87 = scmp.eq.s32.totalorder %s8, 1
    %p88 = por %p86, %p87
    %p89 = scmp.ne.s32.totalorder %s81, %s84
    %p90 = scmp.eq.s32.totalorder %s8, 0
    %p91 = por %p89, %p90
    %p92 = scmp.ne.s32.totalorder %s81, %s84
    %p93 = scmp.eq.s32.totalorder %s13, 1
    %p94 = por %p92, %p93
    %p95 = scmp.ne.s32.totalorder %s84, %s85
    %p96 = scmp.eq.s32.totalorder %s13, 0
    %p97 = por %p95, %p96
    %p98 = scmp.ne.s32.totalorder %s84, %s85
    %p99 = scmp.eq.s32.totalorder %s14, 1
    %p100 = por %p98, %p99
    %p102 = scmp.ne.s32.totalorder %s85, %s101
    %p103 = scmp.eq.s32.totalorder %s14, 0
    %p104 = por %p102, %p103
    %p105 = scmp.le.s32.totalorder 1, %s8
    %p106 = scmp.lt.s32.totalorder %s8, 3
    %p107 = pnand %p105, %p106
    %p108 = pneg %p107
    // Predicated region
    $region9: #{_lambda_.1} parent=5 // pred_check
      _
    $region10: #{_lambda_.1} parent=5 // pred_check_branch
      %110 = sbr.rel (%p107) target = $region12
    $region11: #{_lambda_.1} parent=5 // pred_region
      %s111 = ssub.s32 %s8, 1
      // Predicated region
      $region13: #{_lambda_.1} parent=11 // pred_check
        %p112 = pneg %p69
      $region14: #{_lambda_.1} parent=11 // pred_check_branch
        %114 = sbr.rel (%p112) target = $region16
      $region15: #{_lambda_.1} parent=11 // pred_region
        _
      $region16: #{_lambda_.1} parent=11 // pred_fallthru
        _
    $region12: #{_lambda_.1} parent=5 // pred_fallthru
      _
    %p115 = scmp.lt.s32.totalorder %s8, 2
    // Predicated region
    $region17: #{_lambda_.1} parent=5 // pred_check
      %p116 = pneg %p115
    $region18: #{_lambda_.1} parent=5 // pred_check_branch
      %118 = sbr.rel (%p116) target = $region20
    $region19: #{_lambda_.1} parent=5 // pred_region
      // Predicated region
      $region21: #{_lambda_.1} parent=19 // pred_check
        %p119 = pneg %p42
      $region22: #{_lambda_.1} parent=19 // pred_check_branch
        %121 = sbr.rel (%p119) target = $region24
      $region23: #{_lambda_.1} parent=19 // pred_region
        %p122 = scmp.lt.s32.totalorder %s15, 1
        %s123 = scalar_select %p122, %s15, 1
        %p124 = scmp.lt.s32.totalorder %s16, 0
        %s125 = scalar_select %p124, %s16, 0
        %s126 = smul.addr %s123, 4
        %s127 = sadd.s32 %s125, %s126
        %s128 = smul.addr %s127, 8
        %s129 = scalar_lea.vmem %s0, %s128
      $region24: #{_lambda_.1} parent=19 // pred_fallthru
        _
    $region20: #{_lambda_.1} parent=5 // pred_fallthru
      _
    %p130 = scmp.le.s32.totalorder 1, %s8
    %p131 = scmp.lt.s32.totalorder %s8, 3
    %p132 = pnand %p130, %p131
    %p133 = pneg %p132
    // Predicated region
    $region25: #{_lambda_.1} parent=5 // pred_check
      _
    $region26: #{_lambda_.1} parent=5 // pred_check_branch
      %135 = sbr.rel (%p132) target = $region28
    $region27: #{_lambda_.1} parent=5 // pred_region
      %s136 = ssub.s32 %s8, 1
      %p137 = scmp.lt.s32.totalorder %s17, 1
      %s138 = scalar_select %p137, %s17, 1
      %p139 = scmp.lt.s32.totalorder %s18, 0
      %s140 = scalar_select %p139, %s18, 0
      %s141 = smul.addr %s138, 4
      %s142 = sadd.s32 %s140, %s141
      %s143 = smul.addr %s142, 8
      %s144 = scalar_lea.vmem %s0, %s143
      %p145 = pneg %p48
      %p146 = pneg %p45
      %p147 = pneg %p69
      %p148 = pneg %p66
      %p149 = pneg %p97
      %p150 = pneg %p94
      %p151 = scmp.lt.s32.totalorder %s17, 1
      %s152 = scalar_select %p151, %s17, 1
      %p153 = scmp.lt.s32.totalorder %s18, 0
      %s154 = scalar_select %p153, %s18, 0
      %s155 = sadd.s32 %s154, %s152
      %s156 = smul.addr %s155, 8
      %s157 = scalar_lea.vmem %s2, %s156
      %p158 = scmp.lt.s32.totalorder %s17, 1
      %s159 = scalar_select %p158, %s17, 1
      %p160 = scmp.lt.s32.totalorder %s18, 0
      %s161 = scalar_select %p160, %s18, 0
      %s162 = smul.addr %s159, 4
      %s163 = sadd.s32 %s161, %s162
      %s164 = smul.addr %s163, 8
      %s165 = scalar_lea.vmem %s0, %s164
      %p166 = scmp.lt.s32.totalorder %s17, 1
      %s167 = scalar_select %p166, %s17, 1
      %p168 = scmp.lt.s32.totalorder %s18, 0
      %s169 = scalar_select %p168, %s18, 0
      %s170 = sadd.s32 %s169, %s167
      %s171 = smul.addr %s170, 8
      %s172 = scalar_lea.vmem %s2, %s171
      %v173 = vld [vmem:[%s165] sm:$0xff]
      %v174 = vld [vmem:[%s1] sm:$0xff]
      %v175 = vld [vmem:[%s1 + $0x8] sm:$0xff]
      %v176 = vld [vmem:[%s1 + $0x10] sm:$0xff]
      %v177 = vld [vmem:[%s1 + $0x18] sm:$0xff]
      %s178 = scalar_lea.vmem %s165, 8
      %v179 = vld [vmem:[%s178] sm:$0xff]
      %s180 = scalar_lea.vmem %s1, 32
      %v181 = vld [vmem:[%s180] sm:$0xff]
      %v182 = vld [vmem:[%s180 + $0x8] sm:$0xff]
      %v183 = vld [vmem:[%s180 + $0x10] sm:$0xff]
      %v184 = vld [vmem:[%s180 + $0x18] sm:$0xff]
      %vm185 = vcmask 261120
      %v187 = vsel %vm185, %v179, 0
      %189 = vmatpush.msra.mxu0 0.0
      %190 = vmatpush.msra.mxu0 0.0
      %191 = vmatpush.msra.mxu0 0.0
      %192 = vmatpush.msra.mxu0 0.0
      %193 = vmatpush.msra.mxu0 0.0
      %194 = vmatpush.msra.mxu0 0.0
      %195 = vmatpush.msra.mxu0 0.0
      %196 = vmatpush.msra.mxu0 0.0
      %197 = vmatpush.msra.mxu0 0.0
      %198 = vmatpush.msra.mxu0 0.0
      %199 = vmatpush.msra.mxu0 0.0
      %200 = vmatpush.msra.mxu0 0.0
      %v201 = vand.u32 %v184, 4294901760
      %202 = vmatpush.msra.mxu0 %v201
      %v203 = vand.u32 %v183, 4294901760
      %204 = vmatpush.msra.mxu0 %v203
      %v205 = vand.u32 %v182, 4294901760
      %206 = vmatpush.msra.mxu0 %v205
      %v207 = vand.u32 %v181, 4294901760
      %208 = vmatpush.msra.mxu0 %v207
      %v209 = vand.u32 %v187, 4294901760
      %v210 = vsub.f32 %v187, %v209
      %v211 = vand.u32 %v210, 4294901760
      %v212 = vsub.f32 %v210, %v211
      %v213 = vand.u32 %v212, 4294901760
      %214 = vmatmul.f32.gmra.mxu0 %v213
      %v215 = vpop.f32.mrf.mxu0
      %v216 = vadd.f32 0.0, %v215
      %217 = vdwg.mxu0
      %218 = vmatpush.msra.mxu0 0.0
      %219 = vmatpush.msra.mxu0 0.0
      %220 = vmatpush.msra.mxu0 0.0
      %221 = vmatpush.msra.mxu0 0.0
      %222 = vmatpush.msra.mxu0 0.0
      %223 = vmatpush.msra.mxu0 0.0
      %224 = vmatpush.msra.mxu0 0.0
      %225 = vmatpush.msra.mxu0 0.0
      %226 = vmatpush.msra.mxu0 0.0
      %227 = vmatpush.msra.mxu0 0.0
      %228 = vmatpush.msra.mxu0 0.0
      %229 = vmatpush.msra.mxu0 0.0
      %v230 = vand.u32 %v184, 4294901760
      %v231 = vsub.f32 %v184, %v230
      %v232 = vand.u32 %v231, 4294901760
      %v233 = vsub.f32 %v231, %v232
      %v234 = vand.u32 %v233, 4294901760
      %235 = vmatpush.msra.mxu0 %v234
      %v236 = vand.u32 %v183, 4294901760
      %v237 = vsub.f32 %v183, %v236
      %v238 = vand.u32 %v237, 4294901760
      %v239 = vsub.f32 %v237, %v238
      %v240 = vand.u32 %v239, 4294901760
      %241 = vmatpush.msra.mxu0 %v240
      %v242 = vand.u32 %v182, 4294901760
      %v243 = vsub.f32 %v182, %v242
      %v244 = vand.u32 %v243, 4294901760
      %v245 = vsub.f32 %v243, %v244
      %v246 = vand.u32 %v245, 4294901760
      %247 = vmatpush.msra.mxu0 %v246
      %v248 = vand.u32 %v181, 4294901760
      %v249 = vsub.f32 %v181, %v248
      %v250 = vand.u32 %v249, 4294901760
      %v251 = vsub.f32 %v249, %v250
      %v252 = vand.u32 %v251, 4294901760
      %253 = vmatpush.msra.mxu0 %v252
      %v254 = vand.u32 %v187, 4294901760
      %255 = vmatmul.f32.gmra.mxu0 %v254
      %v256 = vpop.f32.mrf.mxu0
      %v257 = vadd.f32 %v216, %v256
      %258 = vdwg.mxu0
      %259 = vmatpush.msra.mxu0 0.0
      %260 = vmatpush.msra.mxu0 0.0
      %261 = vmatpush.msra.mxu0 0.0
      %262 = vmatpush.msra.mxu0 0.0
      %263 = vmatpush.msra.mxu0 0.0
      %264 = vmatpush.msra.mxu0 0.0
      %265 = vmatpush.msra.mxu0 0.0
      %266 = vmatpush.msra.mxu0 0.0
      %267 = vmatpush.msra.mxu0 0.0
      %268 = vmatpush.msra.mxu0 0.0
      %269 = vmatpush.msra.mxu0 0.0
      %270 = vmatpush.msra.mxu0 0.0
      %v271 = vand.u32 %v184, 4294901760
      %v272 = vsub.f32 %v184, %v271
      %273 = vmatpush.msra.mxu0 %v272
      %v274 = vand.u32 %v183, 4294901760
      %v275 = vsub.f32 %v183, %v274
      %276 = vmatpush.msra.mxu0 %v275
      %v277 = vand.u32 %v182, 4294901760
      %v278 = vsub.f32 %v182, %v277
      %279 = vmatpush.msra.mxu0 %v278
      %v280 = vand.u32 %v181, 4294901760
      %v281 = vsub.f32 %v181, %v280
      %282 = vmatpush.msra.mxu0 %v281
      %v283 = vand.u32 %v187, 4294901760
      %v284 = vsub.f32 %v187, %v283
      %285 = vmatmul.f32.gmra.mxu0 %v284
      %v286 = vpop.f32.mrf.mxu0
      %v287 = vadd.f32 %v257, %v286
      %288 = vdwg.mxu0
      %289 = vmatpush.msra.mxu0 0.0
      %290 = vmatpush.msra.mxu0 0.0
      %291 = vmatpush.msra.mxu0 0.0
      %292 = vmatpush.msra.mxu0 0.0
      %293 = vmatpush.msra.mxu0 0.0
      %294 = vmatpush.msra.mxu0 0.0
      %295 = vmatpush.msra.mxu0 0.0
      %296 = vmatpush.msra.mxu0 0.0
      %297 = vmatpush.msra.mxu0 0.0
      %298 = vmatpush.msra.mxu0 0.0
      %299 = vmatpush.msra.mxu0 0.0
      %300 = vmatpush.msra.mxu0 0.0
      %v301 = vand.u32 %v184, 4294901760
      %302 = vmatpush.msra.mxu0 %v301
      %v303 = vand.u32 %v183, 4294901760
      %304 = vmatpush.msra.mxu0 %v303
      %v305 = vand.u32 %v182, 4294901760
      %306 = vmatpush.msra.mxu0 %v305
      %v307 = vand.u32 %v181, 4294901760
      %308 = vmatpush.msra.mxu0 %v307
      %v309 = vand.u32 %v187, 4294901760
      %v310 = vsub.f32 %v187, %v309
      %v311 = vand.u32 %v310, 4294901760
      %312 = vmatmul.f32.gmra.mxu0 %v311
      %v313 = vpop.f32.mrf.mxu0
      %v314 = vadd.f32 %v287, %v313
      %315 = vdwg.mxu0
      %316 = vmatpush.msra.mxu0 0.0
      %317 = vmatpush.msra.mxu0 0.0
      %318 = vmatpush.msra.mxu0 0.0
      %319 = vmatpush.msra.mxu0 0.0
      %320 = vmatpush.msra.mxu0 0.0
      %321 = vmatpush.msra.mxu0 0.0
      %322 = vmatpush.msra.mxu0 0.0
      %323 = vmatpush.msra.mxu0 0.0
      %324 = vmatpush.msra.mxu0 0.0
      %325 = vmatpush.msra.mxu0 0.0
      %326 = vmatpush.msra.mxu0 0.0
      %327 = vmatpush.msra.mxu0 0.0
      %v328 = vand.u32 %v184, 4294901760
      %v329 = vsub.f32 %v184, %v328
      %v330 = vand.u32 %v329, 4294901760
      %331 = vmatpush.msra.mxu0 %v330
      %v332 = vand.u32 %v183, 4294901760
      %v333 = vsub.f32 %v183, %v332
      %v334 = vand.u32 %v333, 4294901760
      %335 = vmatpush.msra.mxu0 %v334
      %v336 = vand.u32 %v182, 4294901760
      %v337 = vsub.f32 %v182, %v336
      %v338 = vand.u32 %v337, 4294901760
      %339 = vmatpush.msra.mxu0 %v338
      %v340 = vand.u32 %v181, 4294901760
      %v341 = vsub.f32 %v181, %v340
      %v342 = vand.u32 %v341, 4294901760
      %343 = vmatpush.msra.mxu0 %v342
      %v344 = vand.u32 %v187, 4294901760
      %345 = vmatmul.f32.gmra.mxu0 %v344
      %v346 = vpop.f32.mrf.mxu0
      %v347 = vadd.f32 %v314, %v346
      %348 = vdwg.mxu0
      %349 = vmatpush.msra.mxu0 0.0
      %350 = vmatpush.msra.mxu0 0.0
      %351 = vmatpush.msra.mxu0 0.0
      %352 = vmatpush.msra.mxu0 0.0
      %353 = vmatpush.msra.mxu0 0.0
      %354 = vmatpush.msra.mxu0 0.0
      %355 = vmatpush.msra.mxu0 0.0
      %356 = vmatpush.msra.mxu0 0.0
      %357 = vmatpush.msra.mxu0 0.0
      %358 = vmatpush.msra.mxu0 0.0
      %359 = vmatpush.msra.mxu0 0.0
      %360 = vmatpush.msra.mxu0 0.0
      %v361 = vand.u32 %v184, 4294901760
      %362 = vmatpush.msra.mxu0 %v361
      %v363 = vand.u32 %v183, 4294901760
      %364 = vmatpush.msra.mxu0 %v363
      %v365 = vand.u32 %v182, 4294901760
      %366 = vmatpush.msra.mxu0 %v365
      %v367 = vand.u32 %v181, 4294901760
      %368 = vmatpush.msra.mxu0 %v367
      %v369 = vand.u32 %v187, 4294901760
      %370 = vmatmul.f32.gmra.mxu0 %v369
      %v371 = vpop.f32.mrf.mxu0
      %v372 = vadd.f32 %v347, %v371
      %373 = vdwg.mxu0
      %v375 = vsel %vm185, %v173, 0
      %377 = vmatpush.msra.mxu0 0.0
      %378 = vmatpush.msra.mxu0 0.0
      %379 = vmatpush.msra.mxu0 0.0
      %380 = vmatpush.msra.mxu0 0.0
      %381 = vmatpush.msra.mxu0 0.0
      %382 = vmatpush.msra.mxu0 0.0
      %383 = vmatpush.msra.mxu0 0.0
      %384 = vmatpush.msra.mxu0 0.0
      %385 = vmatpush.msra.mxu0 0.0
      %386 = vmatpush.msra.mxu0 0.0
      %387 = vmatpush.msra.mxu0 0.0
      %388 = vmatpush.msra.mxu0 0.0
      %v389 = vand.u32 %v177, 4294901760
      %390 = vmatpush.msra.mxu0 %v389
      %v391 = vand.u32 %v176, 4294901760
      %392 = vmatpush.msra.mxu0 %v391
      %v393 = vand.u32 %v175, 4294901760
      %394 = vmatpush.msra.mxu0 %v393
      %v395 = vand.u32 %v174, 4294901760
      %396 = vmatpush.msra.mxu0 %v395
      %v397 = vand.u32 %v375, 4294901760
      %v398 = vsub.f32 %v375, %v397
      %v399 = vand.u32 %v398, 4294901760
      %v400 = vsub.f32 %v398, %v399
      %v401 = vand.u32 %v400, 4294901760
      %402 = vmatmul.f32.gmra.mxu0 %v401
      %v403 = vpop.f32.mrf.mxu0
      %v404 = vadd.f32 %v372, %v403
      %405 = vdwg.mxu0
      %406 = vmatpush.msra.mxu0 0.0
      %407 = vmatpush.msra.mxu0 0.0
      %408 = vmatpush.msra.mxu0 0.0
      %409 = vmatpush.msra.mxu0 0.0
      %410 = vmatpush.msra.mxu0 0.0
      %411 = vmatpush.msra.mxu0 0.0
      %412 = vmatpush.msra.mxu0 0.0
      %413 = vmatpush.msra.mxu0 0.0
      %414 = vmatpush.msra.mxu0 0.0
      %415 = vmatpush.msra.mxu0 0.0
      %416 = vmatpush.msra.mxu0 0.0
      %417 = vmatpush.msra.mxu0 0.0
      %v418 = vand.u32 %v177, 4294901760
      %v419 = vsub.f32 %v177, %v418
      %v420 = vand.u32 %v419, 4294901760
      %v421 = vsub.f32 %v419, %v420
      %v422 = vand.u32 %v421, 4294901760
      %423 = vmatpush.msra.mxu0 %v422
      %v424 = vand.u32 %v176, 4294901760
      %v425 = vsub.f32 %v176, %v424
      %v426 = vand.u32 %v425, 4294901760
      %v427 = vsub.f32 %v425, %v426
      %v428 = vand.u32 %v427, 4294901760
      %429 = vmatpush.msra.mxu0 %v428
      %v430 = vand.u32 %v175, 4294901760
      %v431 = vsub.f32 %v175, %v430
      %v432 = vand.u32 %v431, 4294901760
      %v433 = vsub.f32 %v431, %v432
      %v434 = vand.u32 %v433, 4294901760
      %435 = vmatpush.msra.mxu0 %v434
      %v436 = vand.u32 %v174, 4294901760
      %v437 = vsub.f32 %v174, %v436
      %v438 = vand.u32 %v437, 4294901760
      %v439 = vsub.f32 %v437, %v438
      %v440 = vand.u32 %v439, 4294901760
      %441 = vmatpush.msra.mxu0 %v440
      %v442 = vand.u32 %v375, 4294901760
      %443 = vmatmul.f32.gmra.mxu0 %v442
      %v444 = vpop.f32.mrf.mxu0
      %v445 = vadd.f32 %v404, %v444
      %446 = vdwg.mxu0
      %447 = vmatpush.msra.mxu0 0.0
      %448 = vmatpush.msra.mxu0 0.0
      %449 = vmatpush.msra.mxu0 0.0
      %450 = vmatpush.msra.mxu0 0.0
      %451 = vmatpush.msra.mxu0 0.0
      %452 = vmatpush.msra.mxu0 0.0
      %453 = vmatpush.msra.mxu0 0.0
      %454 = vmatpush.msra.mxu0 0.0
      %455 = vmatpush.msra.mxu0 0.0
      %456 = vmatpush.msra.mxu0 0.0
      %457 = vmatpush.msra.mxu0 0.0
      %458 = vmatpush.msra.mxu0 0.0
      %v459 = vand.u32 %v177, 4294901760
      %v460 = vsub.f32 %v177, %v459
      %461 = vmatpush.msra.mxu0 %v460
      %v462 = vand.u32 %v176, 4294901760
      %v463 = vsub.f32 %v176, %v462
      %464 = vmatpush.msra.mxu0 %v463
      %v465 = vand.u32 %v175, 4294901760
      %v466 = vsub.f32 %v175, %v465
      %467 = vmatpush.msra.mxu0 %v466
      %v468 = vand.u32 %v174, 4294901760
      %v469 = vsub.f32 %v174, %v468
      %470 = vmatpush.msra.mxu0 %v469
      %v471 = vand.u32 %v375, 4294901760
      %v472 = vsub.f32 %v375, %v471
      %473 = vmatmul.f32.gmra.mxu0 %v472
      %v474 = vpop.f32.mrf.mxu0
      %v475 = vadd.f32 %v445, %v474
      %476 = vdwg.mxu0
      %477 = vmatpush.msra.mxu0 0.0
      %478 = vmatpush.msra.mxu0 0.0
      %479 = vmatpush.msra.mxu0 0.0
      %480 = vmatpush.msra.mxu0 0.0
      %481 = vmatpush.msra.mxu0 0.0
      %482 = vmatpush.msra.mxu0 0.0
      %483 = vmatpush.msra.mxu0 0.0
      %484 = vmatpush.msra.mxu0 0.0
      %485 = vmatpush.msra.mxu0 0.0
      %486 = vmatpush.msra.mxu0 0.0
      %487 = vmatpush.msra.mxu0 0.0
      %488 = vmatpush.msra.mxu0 0.0
      %v489 = vand.u32 %v177, 4294901760
      %490 = vmatpush.msra.mxu0 %v489
      %v491 = vand.u32 %v176, 4294901760
      %492 = vmatpush.msra.mxu0 %v491
      %v493 = vand.u32 %v175, 4294901760
      %494 = vmatpush.msra.mxu0 %v493
      %v495 = vand.u32 %v174, 4294901760
      %496 = vmatpush.msra.mxu0 %v495
      %v497 = vand.u32 %v375, 4294901760
      %v498 = vsub.f32 %v375, %v497
      %v499 = vand.u32 %v498, 4294901760
      %500 = vmatmul.f32.gmra.mxu0 %v499
      %v501 = vpop.f32.mrf.mxu0
      %v502 = vadd.f32 %v475, %v501
      %503 = vdwg.mxu0
      %504 = vmatpush.msra.mxu0 0.0
      %505 = vmatpush.msra.mxu0 0.0
      %506 = vmatpush.msra.mxu0 0.0
      %507 = vmatpush.msra.mxu0 0.0
      %508 = vmatpush.msra.mxu0 0.0
      %509 = vmatpush.msra.mxu0 0.0
      %510 = vmatpush.msra.mxu0 0.0
      %511 = vmatpush.msra.mxu0 0.0
      %512 = vmatpush.msra.mxu0 0.0
      %513 = vmatpush.msra.mxu0 0.0
      %514 = vmatpush.msra.mxu0 0.0
      %515 = vmatpush.msra.mxu0 0.0
      %v516 = vand.u32 %v177, 4294901760
      %v517 = vsub.f32 %v177, %v516
      %v518 = vand.u32 %v517, 4294901760
      %519 = vmatpush.msra.mxu0 %v518
      %v520 = vand.u32 %v176, 4294901760
      %v521 = vsub.f32 %v176, %v520
      %v522 = vand.u32 %v521, 4294901760
      %523 = vmatpush.msra.mxu0 %v522
      %v524 = vand.u32 %v175, 4294901760
      %v525 = vsub.f32 %v175, %v524
      %v526 = vand.u32 %v525, 4294901760
      %527 = vmatpush.msra.mxu0 %v526
      %v528 = vand.u32 %v174, 4294901760
      %v529 = vsub.f32 %v174, %v528
      %v530 = vand.u32 %v529, 4294901760
      %531 = vmatpush.msra.mxu0 %v530
      %v532 = vand.u32 %v375, 4294901760
      %533 = vmatmul.f32.gmra.mxu0 %v532
      %v534 = vpop.f32.mrf.mxu0
      %v535 = vadd.f32 %v502, %v534
      %536 = vdwg.mxu0
      %537 = vmatpush.msra.mxu0 0.0
      %538 = vmatpush.msra.mxu0 0.0
      %539 = vmatpush.msra.mxu0 0.0
      %540 = vmatpush.msra.mxu0 0.0
      %541 = vmatpush.msra.mxu0 0.0
      %542 = vmatpush.msra.mxu0 0.0
      %543 = vmatpush.msra.mxu0 0.0
      %544 = vmatpush.msra.mxu0 0.0
      %545 = vmatpush.msra.mxu0 0.0
      %546 = vmatpush.msra.mxu0 0.0
      %547 = vmatpush.msra.mxu0 0.0
      %548 = vmatpush.msra.mxu0 0.0
      %v549 = vand.u32 %v177, 4294901760
      %550 = vmatpush.msra.mxu0 %v549
      %v551 = vand.u32 %v176, 4294901760
      %552 = vmatpush.msra.mxu0 %v551
      %v553 = vand.u32 %v175, 4294901760
      %554 = vmatpush.msra.mxu0 %v553
      %v555 = vand.u32 %v174, 4294901760
      %556 = vmatpush.msra.mxu0 %v555
      %v557 = vand.u32 %v375, 4294901760
      %558 = vmatmul.f32.gmra.mxu0 %v557
      %v559 = vpop.f32.mrf.mxu0
      %v560 = vadd.f32 %v535, %v559
      %561 = vdwg.mxu0
      %s562 = scalar_lea.vmem %s165, 16
      %v563 = vld [vmem:[%s562] sm:$0xff]
      %s564 = scalar_lea.vmem %s1, 64
      %v565 = vld [vmem:[%s564] sm:$0xff]
      %v566 = vld [vmem:[%s564 + $0x8] sm:$0xff]
      %v567 = vld [vmem:[%s564 + $0x10] sm:$0xff]
      %v568 = vld [vmem:[%s564 + $0x18] sm:$0xff]
      %v570 = vsel %vm185, %v563, 0
      %572 = vmatpush.msra.mxu0 0.0
      %573 = vmatpush.msra.mxu0 0.0
      %574 = vmatpush.msra.mxu0 0.0
      %575 = vmatpush.msra.mxu0 0.0
      %576 = vmatpush.msra.mxu0 0.0
      %577 = vmatpush.msra.mxu0 0.0
      %578 = vmatpush.msra.mxu0 0.0
      %579 = vmatpush.msra.mxu0 0.0
      %580 = vmatpush.msra.mxu0 0.0
      %581 = vmatpush.msra.mxu0 0.0
      %582 = vmatpush.msra.mxu0 0.0
      %583 = vmatpush.msra.mxu0 0.0
      %v584 = vand.u32 %v568, 4294901760
      %585 = vmatpush.msra.mxu0 %v584
      %v586 = vand.u32 %v567, 4294901760
      %587 = vmatpush.msra.mxu0 %v586
      %v588 = vand.u32 %v566, 4294901760
      %589 = vmatpush.msra.mxu0 %v588
      %v590 = vand.u32 %v565, 4294901760
      %591 = vmatpush.msra.mxu0 %v590
      %v592 = vand.u32 %v570, 4294901760
      %v593 = vsub.f32 %v570, %v592
      %v594 = vand.u32 %v593, 4294901760
      %v595 = vsub.f32 %v593, %v594
      %v596 = vand.u32 %v595, 4294901760
      %597 = vmatmul.f32.gmra.mxu0 %v596
      %v598 = vpop.f32.mrf.mxu0
      %v599 = vadd.f32 0.0, %v598
      %600 = vdwg.mxu0
      %601 = vmatpush.msra.mxu0 0.0
      %602 = vmatpush.msra.mxu0 0.0
      %603 = vmatpush.msra.mxu0 0.0
      %604 = vmatpush.msra.mxu0 0.0
      %605 = vmatpush.msra.mxu0 0.0
      %606 = vmatpush.msra.mxu0 0.0
      %607 = vmatpush.msra.mxu0 0.0
      %608 = vmatpush.msra.mxu0 0.0
      %609 = vmatpush.msra.mxu0 0.0
      %610 = vmatpush.msra.mxu0 0.0
      %611 = vmatpush.msra.mxu0 0.0
      %612 = vmatpush.msra.mxu0 0.0
      %v613 = vand.u32 %v568, 4294901760
      %v614 = vsub.f32 %v568, %v613
      %v615 = vand.u32 %v614, 4294901760
      %v616 = vsub.f32 %v614, %v615
      %v617 = vand.u32 %v616, 4294901760
      %618 = vmatpush.msra.mxu0 %v617
      %v619 = vand.u32 %v567, 4294901760
      %v620 = vsub.f32 %v567, %v619
      %v621 = vand.u32 %v620, 4294901760
      %v622 = vsub.f32 %v620, %v621
      %v623 = vand.u32 %v622, 4294901760
      %624 = vmatpush.msra.mxu0 %v623
      %v625 = vand.u32 %v566, 4294901760
      %v626 = vsub.f32 %v566, %v625
      %v627 = vand.u32 %v626, 4294901760
      %v628 = vsub.f32 %v626, %v627
      %v629 = vand.u32 %v628, 4294901760
      %630 = vmatpush.msra.mxu0 %v629
      %v631 = vand.u32 %v565, 4294901760
      %v632 = vsub.f32 %v565, %v631
      %v633 = vand.u32 %v632, 4294901760
      %v634 = vsub.f32 %v632, %v633
      %v635 = vand.u32 %v634, 4294901760
      %636 = vmatpush.msra.mxu0 %v635
      %v637 = vand.u32 %v570, 4294901760
      %638 = vmatmul.f32.gmra.mxu0 %v637
      %v639 = vpop.f32.mrf.mxu0
      %v640 = vadd.f32 %v599, %v639
      %641 = vdwg.mxu0
      %642 = vmatpush.msra.mxu0 0.0
      %643 = vmatpush.msra.mxu0 0.0
      %644 = vmatpush.msra.mxu0 0.0
      %645 = vmatpush.msra.mxu0 0.0
      %646 = vmatpush.msra.mxu0 0.0
      %647 = vmatpush.msra.mxu0 0.0
      %648 = vmatpush.msra.mxu0 0.0
      %649 = vmatpush.msra.mxu0 0.0
      %650 = vmatpush.msra.mxu0 0.0
      %651 = vmatpush.msra.mxu0 0.0
      %652 = vmatpush.msra.mxu0 0.0
      %653 = vmatpush.msra.mxu0 0.0
      %v654 = vand.u32 %v568, 4294901760
      %v655 = vsub.f32 %v568, %v654
      %656 = vmatpush.msra.mxu0 %v655
      %v657 = vand.u32 %v567, 4294901760
      %v658 = vsub.f32 %v567, %v657
      %659 = vmatpush.msra.mxu0 %v658
      %v660 = vand.u32 %v566, 4294901760
      %v661 = vsub.f32 %v566, %v660
      %662 = vmatpush.msra.mxu0 %v661
      %v663 = vand.u32 %v565, 4294901760
      %v664 = vsub.f32 %v565, %v663
      %665 = vmatpush.msra.mxu0 %v664
      %v666 = vand.u32 %v570, 4294901760
      %v667 = vsub.f32 %v570, %v666
      %668 = vmatmul.f32.gmra.mxu0 %v667
      %v669 = vpop.f32.mrf.mxu0
      %v670 = vadd.f32 %v640, %v669
      %671 = vdwg.mxu0
      %672 = vmatpush.msra.mxu0 0.0
      %673 = vmatpush.msra.mxu0 0.0
      %674 = vmatpush.msra.mxu0 0.0
      %675 = vmatpush.msra.mxu0 0.0
      %676 = vmatpush.msra.mxu0 0.0
      %677 = vmatpush.msra.mxu0 0.0
      %678 = vmatpush.msra.mxu0 0.0
      %679 = vmatpush.msra.mxu0 0.0
      %680 = vmatpush.msra.mxu0 0.0
      %681 = vmatpush.msra.mxu0 0.0
      %682 = vmatpush.msra.mxu0 0.0
      %683 = vmatpush.msra.mxu0 0.0
      %v684 = vand.u32 %v568, 4294901760
      %685 = vmatpush.msra.mxu0 %v684
      %v686 = vand.u32 %v567, 4294901760
      %687 = vmatpush.msra.mxu0 %v686
      %v688 = vand.u32 %v566, 4294901760
      %689 = vmatpush.msra.mxu0 %v688
      %v690 = vand.u32 %v565, 4294901760
      %691 = vmatpush.msra.mxu0 %v690
      %v692 = vand.u32 %v570, 4294901760
      %v693 = vsub.f32 %v570, %v692
      %v694 = vand.u32 %v693, 4294901760
      %695 = vmatmul.f32.gmra.mxu0 %v694
      %v696 = vpop.f32.mrf.mxu0
      %v697 = vadd.f32 %v670, %v696
      %698 = vdwg.mxu0
      %699 = vmatpush.msra.mxu0 0.0
      %700 = vmatpush.msra.mxu0 0.0
      %701 = vmatpush.msra.mxu0 0.0
      %702 = vmatpush.msra.mxu0 0.0
      %703 = vmatpush.msra.mxu0 0.0
      %704 = vmatpush.msra.mxu0 0.0
      %705 = vmatpush.msra.mxu0 0.0
      %706 = vmatpush.msra.mxu0 0.0
      %707 = vmatpush.msra.mxu0 0.0
      %708 = vmatpush.msra.mxu0 0.0
      %709 = vmatpush.msra.mxu0 0.0
      %710 = vmatpush.msra.mxu0 0.0
      %v711 = vand.u32 %v568, 4294901760
      %v712 = vsub.f32 %v568, %v711
      %v713 = vand.u32 %v712, 4294901760
      %714 = vmatpush.msra.mxu0 %v713
      %v715 = vand.u32 %v567, 4294901760
      %v716 = vsub.f32 %v567, %v715
      %v717 = vand.u32 %v716, 4294901760
      %718 = vmatpush.msra.mxu0 %v717
      %v719 = vand.u32 %v566, 4294901760
      %v720 = vsub.f32 %v566, %v719
      %v721 = vand.u32 %v720, 4294901760
      %722 = vmatpush.msra.mxu0 %v721
      %v723 = vand.u32 %v565, 4294901760
      %v724 = vsub.f32 %v565, %v723
      %v725 = vand.u32 %v724, 4294901760
      %726 = vmatpush.msra.mxu0 %v725
      %v727 = vand.u32 %v570, 4294901760
      %728 = vmatmul.f32.gmra.mxu0 %v727
      %v729 = vpop.f32.mrf.mxu0
      %v730 = vadd.f32 %v697, %v729
      %731 = vdwg.mxu0
      %732 = vmatpush.msra.mxu0 0.0
      %733 = vmatpush.msra.mxu0 0.0
      %734 = vmatpush.msra.mxu0 0.0
      %735 = vmatpush.msra.mxu0 0.0
      %736 = vmatpush.msra.mxu0 0.0
      %737 = vmatpush.msra.mxu0 0.0
      %738 = vmatpush.msra.mxu0 0.0
      %739 = vmatpush.msra.mxu0 0.0
      %740 = vmatpush.msra.mxu0 0.0
      %741 = vmatpush.msra.mxu0 0.0
      %742 = vmatpush.msra.mxu0 0.0
      %743 = vmatpush.msra.mxu0 0.0
      %v744 = vand.u32 %v568, 4294901760
      %745 = vmatpush.msra.mxu0 %v744
      %v746 = vand.u32 %v567, 4294901760
      %747 = vmatpush.msra.mxu0 %v746
      %v748 = vand.u32 %v566, 4294901760
      %749 = vmatpush.msra.mxu0 %v748
      %v750 = vand.u32 %v565, 4294901760
      %751 = vmatpush.msra.mxu0 %v750
      %v752 = vand.u32 %v570, 4294901760
      %753 = vmatmul.f32.gmra.mxu0 %v752
      %v754 = vpop.f32.mrf.mxu0
      %v755 = vadd.f32 %v730, %v754
      %756 = vdwg.mxu0
      %v757 = vadd.f32 %v560, %v755
      %s758 = scalar_lea.vmem %s165, 24
      %v759 = vld [vmem:[%s758] sm:$0xff]
      %s760 = scalar_lea.vmem %s1, 96
      %v761 = vld [vmem:[%s760] sm:$0xff]
      %v762 = vld [vmem:[%s760 + $0x8] sm:$0xff]
      %v763 = vld [vmem:[%s760 + $0x10] sm:$0xff]
      %v764 = vld [vmem:[%s760 + $0x18] sm:$0xff]
      %v766 = vsel %vm185, %v759, 0
      %768 = vmatpush.msra.mxu0 0.0
      %769 = vmatpush.msra.mxu0 0.0
      %770 = vmatpush.msra.mxu0 0.0
      %771 = vmatpush.msra.mxu0 0.0
      %772 = vmatpush.msra.mxu0 0.0
      %773 = vmatpush.msra.mxu0 0.0
      %774 = vmatpush.msra.mxu0 0.0
      %775 = vmatpush.msra.mxu0 0.0
      %776 = vmatpush.msra.mxu0 0.0
      %777 = vmatpush.msra.mxu0 0.0
      %778 = vmatpush.msra.mxu0 0.0
      %779 = vmatpush.msra.mxu0 0.0
      %v780 = vand.u32 %v764, 4294901760
      %781 = vmatpush.msra.mxu0 %v780
      %v782 = vand.u32 %v763, 4294901760
      %783 = vmatpush.msra.mxu0 %v782
      %v784 = vand.u32 %v762, 4294901760
      %785 = vmatpush.msra.mxu0 %v784
      %v786 = vand.u32 %v761, 4294901760
      %787 = vmatpush.msra.mxu0 %v786
      %v788 = vand.u32 %v766, 4294901760
      %v789 = vsub.f32 %v766, %v788
      %v790 = vand.u32 %v789, 4294901760
      %v791 = vsub.f32 %v789, %v790
      %v792 = vand.u32 %v791, 4294901760
      %793 = vmatmul.f32.gmra.mxu0 %v792
      %v794 = vpop.f32.mrf.mxu0
      %v795 = vadd.f32 0.0, %v794
      %796 = vdwg.mxu0
      %797 = vmatpush.msra.mxu0 0.0
      %798 = vmatpush.msra.mxu0 0.0
      %799 = vmatpush.msra.mxu0 0.0
      %800 = vmatpush.msra.mxu0 0.0
      %801 = vmatpush.msra.mxu0 0.0
      %802 = vmatpush.msra.mxu0 0.0
      %803 = vmatpush.msra.mxu0 0.0
      %804 = vmatpush.msra.mxu0 0.0
      %805 = vmatpush.msra.mxu0 0.0
      %806 = vmatpush.msra.mxu0 0.0
      %807 = vmatpush.msra.mxu0 0.0
      %808 = vmatpush.msra.mxu0 0.0
      %v809 = vand.u32 %v764, 4294901760
      %v810 = vsub.f32 %v764, %v809
      %v811 = vand.u32 %v810, 4294901760
      %v812 = vsub.f32 %v810, %v811
      %v813 = vand.u32 %v812, 4294901760
      %814 = vmatpush.msra.mxu0 %v813
      %v815 = vand.u32 %v763, 4294901760
      %v816 = vsub.f32 %v763, %v815
      %v817 = vand.u32 %v816, 4294901760
      %v818 = vsub.f32 %v816, %v817
      %v819 = vand.u32 %v818, 4294901760
      %820 = vmatpush.msra.mxu0 %v819
      %v821 = vand.u32 %v762, 4294901760
      %v822 = vsub.f32 %v762, %v821
      %v823 = vand.u32 %v822, 4294901760
      %v824 = vsub.f32 %v822, %v823
      %v825 = vand.u32 %v824, 4294901760
      %826 = vmatpush.msra.mxu0 %v825
      %v827 = vand.u32 %v761, 4294901760
      %v828 = vsub.f32 %v761, %v827
      %v829 = vand.u32 %v828, 4294901760
      %v830 = vsub.f32 %v828, %v829
      %v831 = vand.u32 %v830, 4294901760
      %832 = vmatpush.msra.mxu0 %v831
      %v833 = vand.u32 %v766, 4294901760
      %834 = vmatmul.f32.gmra.mxu0 %v833
      %v835 = vpop.f32.mrf.mxu0
      %v836 = vadd.f32 %v795, %v835
      %837 = vdwg.mxu0
      %838 = vmatpush.msra.mxu0 0.0
      %839 = vmatpush.msra.mxu0 0.0
      %840 = vmatpush.msra.mxu0 0.0
      %841 = vmatpush.msra.mxu0 0.0
      %842 = vmatpush.msra.mxu0 0.0
      %843 = vmatpush.msra.mxu0 0.0
      %844 = vmatpush.msra.mxu0 0.0
      %845 = vmatpush.msra.mxu0 0.0
      %846 = vmatpush.msra.mxu0 0.0
      %847 = vmatpush.msra.mxu0 0.0
      %848 = vmatpush.msra.mxu0 0.0
      %849 = vmatpush.msra.mxu0 0.0
      %v850 = vand.u32 %v764, 4294901760
      %v851 = vsub.f32 %v764, %v850
      %852 = vmatpush.msra.mxu0 %v851
      %v853 = vand.u32 %v763, 4294901760
      %v854 = vsub.f32 %v763, %v853
      %855 = vmatpush.msra.mxu0 %v854
      %v856 = vand.u32 %v762, 4294901760
      %v857 = vsub.f32 %v762, %v856
      %858 = vmatpush.msra.mxu0 %v857
      %v859 = vand.u32 %v761, 4294901760
      %v860 = vsub.f32 %v761, %v859
      %861 = vmatpush.msra.mxu0 %v860
      %v862 = vand.u32 %v766, 4294901760
      %v863 = vsub.f32 %v766, %v862
      %864 = vmatmul.f32.gmra.mxu0 %v863
      %v865 = vpop.f32.mrf.mxu0
      %v866 = vadd.f32 %v836, %v865
      %867 = vdwg.mxu0
      %868 = vmatpush.msra.mxu0 0.0
      %869 = vmatpush.msra.mxu0 0.0
      %870 = vmatpush.msra.mxu0 0.0
      %871 = vmatpush.msra.mxu0 0.0
      %872 = vmatpush.msra.mxu0 0.0
      %873 = vmatpush.msra.mxu0 0.0
      %874 = vmatpush.msra.mxu0 0.0
      %875 = vmatpush.msra.mxu0 0.0
      %876 = vmatpush.msra.mxu0 0.0
      %877 = vmatpush.msra.mxu0 0.0
      %878 = vmatpush.msra.mxu0 0.0
      %879 = vmatpush.msra.mxu0 0.0
      %v880 = vand.u32 %v764, 4294901760
      %881 = vmatpush.msra.mxu0 %v880
      %v882 = vand.u32 %v763, 4294901760
      %883 = vmatpush.msra.mxu0 %v882
      %v884 = vand.u32 %v762, 4294901760
      %885 = vmatpush.msra.mxu0 %v884
      %v886 = vand.u32 %v761, 4294901760
      %887 = vmatpush.msra.mxu0 %v886
      %v888 = vand.u32 %v766, 4294901760
      %v889 = vsub.f32 %v766, %v888
      %v890 = vand.u32 %v889, 4294901760
      %891 = vmatmul.f32.gmra.mxu0 %v890
      %v892 = vpop.f32.mrf.mxu0
      %v893 = vadd.f32 %v866, %v892
      %894 = vdwg.mxu0
      %895 = vmatpush.msra.mxu0 0.0
      %896 = vmatpush.msra.mxu0 0.0
      %897 = vmatpush.msra.mxu0 0.0
      %898 = vmatpush.msra.mxu0 0.0
      %899 = vmatpush.msra.mxu0 0.0
      %900 = vmatpush.msra.mxu0 0.0
      %901 = vmatpush.msra.mxu0 0.0
      %902 = vmatpush.msra.mxu0 0.0
      %903 = vmatpush.msra.mxu0 0.0
      %904 = vmatpush.msra.mxu0 0.0
      %905 = vmatpush.msra.mxu0 0.0
      %906 = vmatpush.msra.mxu0 0.0
      %v907 = vand.u32 %v764, 4294901760
      %v908 = vsub.f32 %v764, %v907
      %v909 = vand.u32 %v908, 4294901760
      %910 = vmatpush.msra.mxu0 %v909
      %v911 = vand.u32 %v763, 4294901760
      %v912 = vsub.f32 %v763, %v911
      %v913 = vand.u32 %v912, 4294901760
      %914 = vmatpush.msra.mxu0 %v913
      %v915 = vand.u32 %v762, 4294901760
      %v916 = vsub.f32 %v762, %v915
      %v917 = vand.u32 %v916, 4294901760
      %918 = vmatpush.msra.mxu0 %v917
      %v919 = vand.u32 %v761, 4294901760
      %v920 = vsub.f32 %v761, %v919
      %v921 = vand.u32 %v920, 4294901760
      %922 = vmatpush.msra.mxu0 %v921
      %v923 = vand.u32 %v766, 4294901760
      %924 = vmatmul.f32.gmra.mxu0 %v923
      %v925 = vpop.f32.mrf.mxu0
      %v926 = vadd.f32 %v893, %v925
      %927 = vdwg.mxu0
      %928 = vmatpush.msra.mxu0 0.0
      %929 = vmatpush.msra.mxu0 0.0
      %930 = vmatpush.msra.mxu0 0.0
      %931 = vmatpush.msra.mxu0 0.0
      %932 = vmatpush.msra.mxu0 0.0
      %933 = vmatpush.msra.mxu0 0.0
      %934 = vmatpush.msra.mxu0 0.0
      %935 = vmatpush.msra.mxu0 0.0
      %936 = vmatpush.msra.mxu0 0.0
      %937 = vmatpush.msra.mxu0 0.0
      %938 = vmatpush.msra.mxu0 0.0
      %939 = vmatpush.msra.mxu0 0.0
      %v940 = vand.u32 %v764, 4294901760
      %941 = vmatpush.msra.mxu0 %v940
      %v942 = vand.u32 %v763, 4294901760
      %943 = vmatpush.msra.mxu0 %v942
      %v944 = vand.u32 %v762, 4294901760
      %945 = vmatpush.msra.mxu0 %v944
      %v946 = vand.u32 %v761, 4294901760
      %947 = vmatpush.msra.mxu0 %v946
      %v948 = vand.u32 %v766, 4294901760
      %949 = vmatmul.f32.gmra.mxu0 %v948
      %v950 = vpop.f32.mrf.mxu0
      %v951 = vadd.f32 %v926, %v950
      %952 = vdwg.mxu0
      %v953 = vadd.f32 %v757, %v951
      %954 = vst [vmem:[%s172] sm:$0xff] %v953
      %p955 = scmp.lt.s32.totalorder %s17, 1
      %s956 = scalar_select %p955, %s17, 1
      %p957 = scmp.lt.s32.totalorder %s18, 0
      %s958 = scalar_select %p957, %s18, 0
      %s959 = sadd.s32 %s958, %s956
      %s960 = smul.addr %s959, 8
      %s961 = scalar_lea.vmem %s2, %s960
      // Predicated region
      $region29: #{_lambda_.1} parent=27 // pred_check
        %p962 = pneg %p94
      $region30: #{_lambda_.1} parent=27 // pred_check_branch
        %964 = sbr.rel (%p962) target = $region32
      $region31: #{_lambda_.1} parent=27 // pred_region
        _
      $region32: #{_lambda_.1} parent=27 // pred_fallthru
        _
    $region28: #{_lambda_.1} parent=5 // pred_fallthru
      _
    %p965 = scmp.le.s32.totalorder 2, %s8
    // Predicated region
    $region33: #{_lambda_.1} parent=5 // pred_check
      %p966 = pneg %p965
    $region34: #{_lambda_.1} parent=5 // pred_check_branch
      %968 = sbr.rel (%p966) target = $region36
    $region35: #{_lambda_.1} parent=5 // pred_region
      %s969 = ssub.s32 %s8, 2
      // Predicated region
      $region37: #{_lambda_.1} parent=35 // pred_check
        %p970 = pneg %p100
      $region38: #{_lambda_.1} parent=35 // pred_check_branch
        %972 = sbr.rel (%p970) target = $region40
      $region39: #{_lambda_.1} parent=35 // pred_region
        %p973 = scmp.lt.s32.totalorder %s19, 1
        %s974 = scalar_select %p973, %s19, 1
        %p975 = scmp.lt.s32.totalorder %s20, 0
        %s976 = scalar_select %p975, %s20, 0
        %s977 = sadd.s32 %s976, %s974
        %s978 = smul.addr %s977, 8
        %s979 = scalar_lea.vmem %s2, %s978
      $region40: #{_lambda_.1} parent=35 // pred_fallthru
        _
    $region36: #{_lambda_.1} parent=5 // pred_fallthru
      _
  $region6: #{_lambda_.1} parent=0 // loop_footer
    %s12 = sadd.s32 1, %s8
  $region7: #{_lambda_.1} parent=0 // loop_footer_branch
    %7 = sbr.rel target = $region3
  $region8: #{_lambda_.1} parent=0 // loop_exit
    _

</llo_original>
